<compile_context>
chip_gen: v7x
topology: tpu7x:2x2x1
jax: 0.10.0
libtpu: 0.0.40
codegen_flags: <defaults>
</compile_context>

<pallas_src>
import jax
import jax.numpy as jnp
from jax.experimental import pallas as pl
from jax.experimental.pallas import tpu as pltpu


def _round_up(n, m):
    return ((n + m - 1) // m) * m


def _sigmoid(z):
    # exp -> EUP, approximate reciprocal -> EUP; no VALU divide / Newton iteration.
    return pl.reciprocal(1.0 + jnp.exp(-z), approx=True)


def _mlp_kernel(x_ref, w1_ref, b1_ref, w2_ref, b2_ref, w3_ref, b3_ref, o_ref):
    # x_ref : (6, SUB, LANES) VMEM tile -- batch occupies the sublane x lane grid.
    # w*_ref: flat f32 SMEM arrays in PyTorch (out, in) row-major; b*_ref: (out,).
    # o_ref : (SUB, LANES) VMEM tile (lane-dense output).
    xs = [x_ref[k] for k in range(6)]                   # 6 x (SUB, LANES) dense slabs

    # Layer 1: 6 -> 4  (unrolled VPU broadcast-FMA)
    h1 = []
    for j in range(4):
        acc = xs[0] * w1_ref[j * 6 + 0]
        for k in range(1, 6):
            acc = acc + xs[k] * w1_ref[j * 6 + k]
        h1.append(_sigmoid(acc + b1_ref[j]))

    # Layer 2: 4 -> 2
    h2 = []
    for j in range(2):
        acc = h1[0] * w2_ref[j * 4 + 0]
        for k in range(1, 4):
            acc = acc + h1[k] * w2_ref[j * 4 + k]
        h2.append(_sigmoid(acc + b2_ref[j]))

    # Layer 3: 2 -> 1
    acc = h2[0] * w3_ref[0] + h2[1] * w3_ref[1]
    o_ref[...] = _sigmoid(acc + b3_ref[0])


def net_forward(x, params, *, sublane_tile=8, lane_tile=512):
    """x: (B, 6) float32.  params: PyTorch layout w{i}: (out, in), b{i}: (out,)."""
    B = x.shape[0]
    tb = sublane_tile * lane_tile                       # batch elements per grid step
    b_pad = _round_up(B, tb)
    n_blocks = b_pad // tb

    # Lane-major layout: batch b -> (row = b // lane_tile, lane = b % lane_tile).
    xt = jnp.pad(x.astype(jnp.float32).T, ((0, 0), (0, b_pad - B)))      # (6, b_pad)
    x3 = xt.reshape(6, n_blocks * sublane_tile, lane_tile)

    smem = pl.BlockSpec(memory_space=pltpu.MemorySpace.SMEM)
    cost = pl.CostEstimate(
        flops=2 * B * (6 * 4 + 4 * 2 + 2 * 1),
        transcendentals=7 * B,
        bytes_accessed=(6 + 1) * B * 4,
    )

    out3 = pl.pallas_call(
        _mlp_kernel,
        out_shape=jax.ShapeDtypeStruct((n_blocks * sublane_tile, lane_tile),
                                       jnp.float32),
        grid=(n_blocks,),
        in_specs=[
            pl.BlockSpec((6, sublane_tile, lane_tile), lambda i: (0, i, 0)),
            smem, smem, smem, smem, smem, smem,
        ],
        out_specs=pl.BlockSpec((sublane_tile, lane_tile), lambda i: (i, 0)),
        compiler_params=pltpu.CompilerParams(
            dimension_semantics=("parallel",),          # v7x: shard tiles across 2 TCs
        ),
        cost_estimate=cost,
    )(x3,
      params["w1"].reshape(-1), params["b1"].reshape(-1),
      params["w2"].reshape(-1), params["b2"].reshape(-1),
      params["w3"].reshape(-1), params["b3"].reshape(-1))

    return out3.reshape(b_pad)[:B].reshape(B, 1)


def init_params(key):
    """torch.nn.Linear-style init (U[-1/sqrt(fan_in), 1/sqrt(fan_in)]), PyTorch layout."""
    dims = [(6, 4), (4, 2), (2, 1)]
    params = {}
    for i, (fan_in, fan_out) in enumerate(dims, start=1):
        key, kw, kb = jax.random.split(key, 3)
        bound = 1.0 / (fan_in ** 0.5)
        params[f"w{i}"] = jax.random.uniform(
            kw, (fan_out, fan_in), jnp.float32, -bound, bound)   # (out, in), as in torch
        params[f"b{i}"] = jax.random.uniform(
            kb, (fan_out,), jnp.float32, -bound, bound)
    return params


def ref_forward(x, p):
    h = jax.nn.sigmoid(x @ p["w1"].T + p["b1"])
    h = jax.nn.sigmoid(h @ p["w2"].T + p["b2"])
    return jax.nn.sigmoid(h @ p["w3"].T + p["b3"])


if __name__ == "__main__":
    key = jax.random.PRNGKey(0)
    key, kx1, kx2 = jax.random.split(key, 3)
    params = init_params(key)

    # Small batch (single padded grid step).
    x_small = jax.random.normal(kx1, (8, 6), dtype=jnp.float32)
    out_small = jax.block_until_ready(net_forward(x_small, params))
    exp_small = ref_forward(x_small, params)
    assert out_small.shape == (8, 1)
    assert jnp.allclose(out_small, exp_small, atol=2e-3), "mismatch (small batch)"

    # Batch spanning multiple grid steps (exercises tiling + ragged-tail padding).
    x_big = jax.random.normal(kx2, (5000, 6), dtype=jnp.float32)
    out_big = jax.block_until_ready(net_forward(x_big, params))
    exp_big = ref_forward(x_big, params)
    assert out_big.shape == (5000, 1)
    assert jnp.allclose(out_big, exp_big, atol=2e-3), "mismatch (tiled batch)"

    print("KERNEL_OK")
</pallas_src>

<mosaic_0001>
module attributes {stable_mosaic.version = 11 : i64} {
  func.func @_mlp_kernel(%arg0: i32, %arg1: memref<6x8x512xf32, #tpu.memory_space<vmem>>, %arg2: memref<24xf32, #tpu.memory_space<smem>>, %arg3: memref<4xf32, #tpu.memory_space<smem>>, %arg4: memref<8xf32, #tpu.memory_space<smem>>, %arg5: memref<2xf32, #tpu.memory_space<smem>>, %arg6: memref<2xf32, #tpu.memory_space<smem>>, %arg7: memref<1xf32, #tpu.memory_space<smem>>, %arg8: memref<8x512xf32, #tpu.memory_space<vmem>>) attributes {dimension_semantics = [#tpu.dimension_semantics<parallel>], iteration_bounds = array<i64: 1>, scalar_prefetch = 0 : i64, scratch_operands = 0 : i64, tpu.core_type = #tpu.core_type<tc>, window_params = [{transform_indices = @transform_0, window_bounds = array<i64: 6, 8, 512>}, {transform_indices = @transform_1, window_bounds = array<i64: 24>}, {transform_indices = @transform_2, window_bounds = array<i64: 4>}, {transform_indices = @transform_3, window_bounds = array<i64: 8>}, {transform_indices = @transform_4, window_bounds = array<i64: 2>}, {transform_indices = @transform_5, window_bounds = array<i64: 2>}, {transform_indices = @transform_6, window_bounds = array<i64: 1>}, {transform_indices = @transform_7, window_bounds = array<i64: 8, 512>}]} {
    %c0 = arith.constant 0 : index
    %c0_0 = arith.constant 0 : index
    %c0_1 = arith.constant 0 : index
    %0 = vector.load %arg1[%c0, %c0_0, %c0_1] : memref<6x8x512xf32, #tpu.memory_space<vmem>>, vector<1x8x512xf32>
    %1 = vector.shape_cast %0 : vector<1x8x512xf32> to vector<8x512xf32>
    %c1 = arith.constant 1 : index
    %c0_2 = arith.constant 0 : index
    %c0_3 = arith.constant 0 : index
    %2 = vector.load %arg1[%c1, %c0_2, %c0_3] : memref<6x8x512xf32, #tpu.memory_space<vmem>>, vector<1x8x512xf32>
    %3 = vector.shape_cast %2 : vector<1x8x512xf32> to vector<8x512xf32>
    %c2 = arith.constant 2 : index
    %c0_4 = arith.constant 0 : index
    %c0_5 = arith.constant 0 : index
    %4 = vector.load %arg1[%c2, %c0_4, %c0_5] : memref<6x8x512xf32, #tpu.memory_space<vmem>>, vector<1x8x512xf32>
    %5 = vector.shape_cast %4 : vector<1x8x512xf32> to vector<8x512xf32>
    %c3 = arith.constant 3 : index
    %c0_6 = arith.constant 0 : index
    %c0_7 = arith.constant 0 : index
    %6 = vector.load %arg1[%c3, %c0_6, %c0_7] : memref<6x8x512xf32, #tpu.memory_space<vmem>>, vector<1x8x512xf32>
    %7 = vector.shape_cast %6 : vector<1x8x512xf32> to vector<8x512xf32>
    %c4 = arith.constant 4 : index
    %c0_8 = arith.constant 0 : index
    %c0_9 = arith.constant 0 : index
    %8 = vector.load %arg1[%c4, %c0_8, %c0_9] : memref<6x8x512xf32, #tpu.memory_space<vmem>>, vector<1x8x512xf32>
    %9 = vector.shape_cast %8 : vector<1x8x512xf32> to vector<8x512xf32>
    %c5 = arith.constant 5 : index
    %c0_10 = arith.constant 0 : index
    %c0_11 = arith.constant 0 : index
    %10 = vector.load %arg1[%c5, %c0_10, %c0_11] : memref<6x8x512xf32, #tpu.memory_space<vmem>>, vector<1x8x512xf32>
    %11 = vector.shape_cast %10 : vector<1x8x512xf32> to vector<8x512xf32>
    %c0_12 = arith.constant 0 : index
    %12 = memref.load %arg2[%c0_12] : memref<24xf32, #tpu.memory_space<smem>>
    %13 = vector.broadcast %12 : f32 to vector<8x512xf32>
    %14 = arith.mulf %1, %13 : vector<8x512xf32>
    %c1_13 = arith.constant 1 : index
    %15 = memref.load %arg2[%c1_13] : memref<24xf32, #tpu.memory_space<smem>>
    %16 = vector.broadcast %15 : f32 to vector<8x512xf32>
    %17 = arith.mulf %3, %16 : vector<8x512xf32>
    %18 = arith.addf %14, %17 : vector<8x512xf32>
    %c2_14 = arith.constant 2 : index
    %19 = memref.load %arg2[%c2_14] : memref<24xf32, #tpu.memory_space<smem>>
    %20 = vector.broadcast %19 : f32 to vector<8x512xf32>
    %21 = arith.mulf %5, %20 : vector<8x512xf32>
    %22 = arith.addf %18, %21 : vector<8x512xf32>
    %c3_15 = arith.constant 3 : index
    %23 = memref.load %arg2[%c3_15] : memref<24xf32, #tpu.memory_space<smem>>
    %24 = vector.broadcast %23 : f32 to vector<8x512xf32>
    %25 = arith.mulf %7, %24 : vector<8x512xf32>
    %26 = arith.addf %22, %25 : vector<8x512xf32>
    %c4_16 = arith.constant 4 : index
    %27 = memref.load %arg2[%c4_16] : memref<24xf32, #tpu.memory_space<smem>>
    %28 = vector.broadcast %27 : f32 to vector<8x512xf32>
    %29 = arith.mulf %9, %28 : vector<8x512xf32>
    %30 = arith.addf %26, %29 : vector<8x512xf32>
    %c5_17 = arith.constant 5 : index
    %31 = memref.load %arg2[%c5_17] : memref<24xf32, #tpu.memory_space<smem>>
    %32 = vector.broadcast %31 : f32 to vector<8x512xf32>
    %33 = arith.mulf %11, %32 : vector<8x512xf32>
    %34 = arith.addf %30, %33 : vector<8x512xf32>
    %c0_18 = arith.constant 0 : index
    %35 = memref.load %arg3[%c0_18] : memref<4xf32, #tpu.memory_space<smem>>
    %36 = vector.broadcast %35 : f32 to vector<8x512xf32>
    %37 = arith.addf %34, %36 : vector<8x512xf32>
    %cst = arith.constant 0.000000e+00 : f32
    %38 = vector.broadcast %cst : f32 to vector<8x512xf32>
    %39 = arith.subf %38, %37 : vector<8x512xf32>
    %40 = math.exp %39 : vector<8x512xf32>
    %cst_19 = arith.constant 1.000000e+00 : f32
    %41 = vector.broadcast %cst_19 : f32 to vector<8x512xf32>
    %42 = arith.addf %41, %40 : vector<8x512xf32>
    %43 = tpu.reciprocal %42 {approx = true} : vector<8x512xf32> -> vector<8x512xf32>
    %c6 = arith.constant 6 : index
    %44 = memref.load %arg2[%c6] : memref<24xf32, #tpu.memory_space<smem>>
    %45 = vector.broadcast %44 : f32 to vector<8x512xf32>
    %46 = arith.mulf %1, %45 : vector<8x512xf32>
    %c7 = arith.constant 7 : index
    %47 = memref.load %arg2[%c7] : memref<24xf32, #tpu.memory_space<smem>>
    %48 = vector.broadcast %47 : f32 to vector<8x512xf32>
    %49 = arith.mulf %3, %48 : vector<8x512xf32>
    %50 = arith.addf %46, %49 : vector<8x512xf32>
    %c8 = arith.constant 8 : index
    %51 = memref.load %arg2[%c8] : memref<24xf32, #tpu.memory_space<smem>>
    %52 = vector.broadcast %51 : f32 to vector<8x512xf32>
    %53 = arith.mulf %5, %52 : vector<8x512xf32>
    %54 = arith.addf %50, %53 : vector<8x512xf32>
    %c9 = arith.constant 9 : index
    %55 = memref.load %arg2[%c9] : memref<24xf32, #tpu.memory_space<smem>>
    %56 = vector.broadcast %55 : f32 to vector<8x512xf32>
    %57 = arith.mulf %7, %56 : vector<8x512xf32>
    %58 = arith.addf %54, %57 : vector<8x512xf32>
    %c10 = arith.constant 10 : index
    %59 = memref.load %arg2[%c10] : memref<24xf32, #tpu.memory_space<smem>>
    %60 = vector.broadcast %59 : f32 to vector<8x512xf32>
    %61 = arith.mulf %9, %60 : vector<8x512xf32>
    %62 = arith.addf %58, %61 : vector<8x512xf32>
    %c11 = arith.constant 11 : index
    %63 = memref.load %arg2[%c11] : memref<24xf32, #tpu.memory_space<smem>>
    %64 = vector.broadcast %63 : f32 to vector<8x512xf32>
    %65 = arith.mulf %11, %64 : vector<8x512xf32>
    %66 = arith.addf %62, %65 : vector<8x512xf32>
    %c1_20 = arith.constant 1 : index
    %67 = memref.load %arg3[%c1_20] : memref<4xf32, #tpu.memory_space<smem>>
    %68 = vector.broadcast %67 : f32 to vector<8x512xf32>
    %69 = arith.addf %66, %68 : vector<8x512xf32>
    %cst_21 = arith.constant 0.000000e+00 : f32
    %70 = vector.broadcast %cst_21 : f32 to vector<8x512xf32>
    %71 = arith.subf %70, %69 : vector<8x512xf32>
    %72 = math.exp %71 : vector<8x512xf32>
    %cst_22 = arith.constant 1.000000e+00 : f32
    %73 = vector.broadcast %cst_22 : f32 to vector<8x512xf32>
    %74 = arith.addf %73, %72 : vector<8x512xf32>
    %75 = tpu.reciprocal %74 {approx = true} : vector<8x512xf32> -> vector<8x512xf32>
    %c12 = arith.constant 12 : index
    %76 = memref.load %arg2[%c12] : memref<24xf32, #tpu.memory_space<smem>>
    %77 = vector.broadcast %76 : f32 to vector<8x512xf32>
    %78 = arith.mulf %1, %77 : vector<8x512xf32>
    %c13 = arith.constant 13 : index
    %79 = memref.load %arg2[%c13] : memref<24xf32, #tpu.memory_space<smem>>
    %80 = vector.broadcast %79 : f32 to vector<8x512xf32>
    %81 = arith.mulf %3, %80 : vector<8x512xf32>
    %82 = arith.addf %78, %81 : vector<8x512xf32>
    %c14 = arith.constant 14 : index
    %83 = memref.load %arg2[%c14] : memref<24xf32, #tpu.memory_space<smem>>
    %84 = vector.broadcast %83 : f32 to vector<8x512xf32>
    %85 = arith.mulf %5, %84 : vector<8x512xf32>
    %86 = arith.addf %82, %85 : vector<8x512xf32>
    %c15 = arith.constant 15 : index
    %87 = memref.load %arg2[%c15] : memref<24xf32, #tpu.memory_space<smem>>
    %88 = vector.broadcast %87 : f32 to vector<8x512xf32>
    %89 = arith.mulf %7, %88 : vector<8x512xf32>
    %90 = arith.addf %86, %89 : vector<8x512xf32>
    %c16 = arith.constant 16 : index
    %91 = memref.load %arg2[%c16] : memref<24xf32, #tpu.memory_space<smem>>
    %92 = vector.broadcast %91 : f32 to vector<8x512xf32>
    %93 = arith.mulf %9, %92 : vector<8x512xf32>
    %94 = arith.addf %90, %93 : vector<8x512xf32>
    %c17 = arith.constant 17 : index
    %95 = memref.load %arg2[%c17] : memref<24xf32, #tpu.memory_space<smem>>
    %96 = vector.broadcast %95 : f32 to vector<8x512xf32>
    %97 = arith.mulf %11, %96 : vector<8x512xf32>
    %98 = arith.addf %94, %97 : vector<8x512xf32>
    %c2_23 = arith.constant 2 : index
    %99 = memref.load %arg3[%c2_23] : memref<4xf32, #tpu.memory_space<smem>>
    %100 = vector.broadcast %99 : f32 to vector<8x512xf32>
    %101 = arith.addf %98, %100 : vector<8x512xf32>
    %cst_24 = arith.constant 0.000000e+00 : f32
    %102 = vector.broadcast %cst_24 : f32 to vector<8x512xf32>
    %103 = arith.subf %102, %101 : vector<8x512xf32>
    %104 = math.exp %103 : vector<8x512xf32>
    %cst_25 = arith.constant 1.000000e+00 : f32
    %105 = vector.broadcast %cst_25 : f32 to vector<8x512xf32>
    %106 = arith.addf %105, %104 : vector<8x512xf32>
    %107 = tpu.reciprocal %106 {approx = true} : vector<8x512xf32> -> vector<8x512xf32>
    %c18 = arith.constant 18 : index
    %108 = memref.load %arg2[%c18] : memref<24xf32, #tpu.memory_space<smem>>
    %109 = vector.broadcast %108 : f32 to vector<8x512xf32>
    %110 = arith.mulf %1, %109 : vector<8x512xf32>
    %c19 = arith.constant 19 : index
    %111 = memref.load %arg2[%c19] : memref<24xf32, #tpu.memory_space<smem>>
    %112 = vector.broadcast %111 : f32 to vector<8x512xf32>
    %113 = arith.mulf %3, %112 : vector<8x512xf32>
    %114 = arith.addf %110, %113 : vector<8x512xf32>
    %c20 = arith.constant 20 : index
    %115 = memref.load %arg2[%c20] : memref<24xf32, #tpu.memory_space<smem>>
    %116 = vector.broadcast %115 : f32 to vector<8x512xf32>
    %117 = arith.mulf %5, %116 : vector<8x512xf32>
    %118 = arith.addf %114, %117 : vector<8x512xf32>
    %c21 = arith.constant 21 : index
    %119 = memref.load %arg2[%c21] : memref<24xf32, #tpu.memory_space<smem>>
    %120 = vector.broadcast %119 : f32 to vector<8x512xf32>
    %121 = arith.mulf %7, %120 : vector<8x512xf32>
    %122 = arith.addf %118, %121 : vector<8x512xf32>
    %c22 = arith.constant 22 : index
    %123 = memref.load %arg2[%c22] : memref<24xf32, #tpu.memory_space<smem>>
    %124 = vector.broadcast %123 : f32 to vector<8x512xf32>
    %125 = arith.mulf %9, %124 : vector<8x512xf32>
    %126 = arith.addf %122, %125 : vector<8x512xf32>
    %c23 = arith.constant 23 : index
    %127 = memref.load %arg2[%c23] : memref<24xf32, #tpu.memory_space<smem>>
    %128 = vector.broadcast %127 : f32 to vector<8x512xf32>
    %129 = arith.mulf %11, %128 : vector<8x512xf32>
    %130 = arith.addf %126, %129 : vector<8x512xf32>
    %c3_26 = arith.constant 3 : index
    %131 = memref.load %arg3[%c3_26] : memref<4xf32, #tpu.memory_space<smem>>
    %132 = vector.broadcast %131 : f32 to vector<8x512xf32>
    %133 = arith.addf %130, %132 : vector<8x512xf32>
    %cst_27 = arith.constant 0.000000e+00 : f32
    %134 = vector.broadcast %cst_27 : f32 to vector<8x512xf32>
    %135 = arith.subf %134, %133 : vector<8x512xf32>
    %136 = math.exp %135 : vector<8x512xf32>
    %cst_28 = arith.constant 1.000000e+00 : f32
    %137 = vector.broadcast %cst_28 : f32 to vector<8x512xf32>
    %138 = arith.addf %137, %136 : vector<8x512xf32>
    %139 = tpu.reciprocal %138 {approx = true} : vector<8x512xf32> -> vector<8x512xf32>
    %c0_29 = arith.constant 0 : index
    %140 = memref.load %arg4[%c0_29] : memref<8xf32, #tpu.memory_space<smem>>
    %141 = vector.broadcast %140 : f32 to vector<8x512xf32>
    %142 = arith.mulf %43, %141 : vector<8x512xf32>
    %c1_30 = arith.constant 1 : index
    %143 = memref.load %arg4[%c1_30] : memref<8xf32, #tpu.memory_space<smem>>
    %144 = vector.broadcast %143 : f32 to vector<8x512xf32>
    %145 = arith.mulf %75, %144 : vector<8x512xf32>
    %146 = arith.addf %142, %145 : vector<8x512xf32>
    %c2_31 = arith.constant 2 : index
    %147 = memref.load %arg4[%c2_31] : memref<8xf32, #tpu.memory_space<smem>>
    %148 = vector.broadcast %147 : f32 to vector<8x512xf32>
    %149 = arith.mulf %107, %148 : vector<8x512xf32>
    %150 = arith.addf %146, %149 : vector<8x512xf32>
    %c3_32 = arith.constant 3 : index
    %151 = memref.load %arg4[%c3_32] : memref<8xf32, #tpu.memory_space<smem>>
    %152 = vector.broadcast %151 : f32 to vector<8x512xf32>
    %153 = arith.mulf %139, %152 : vector<8x512xf32>
    %154 = arith.addf %150, %153 : vector<8x512xf32>
    %c0_33 = arith.constant 0 : index
    %155 = memref.load %arg5[%c0_33] : memref<2xf32, #tpu.memory_space<smem>>
    %156 = vector.broadcast %155 : f32 to vector<8x512xf32>
    %157 = arith.addf %154, %156 : vector<8x512xf32>
    %cst_34 = arith.constant 0.000000e+00 : f32
    %158 = vector.broadcast %cst_34 : f32 to vector<8x512xf32>
    %159 = arith.subf %158, %157 : vector<8x512xf32>
    %160 = math.exp %159 : vector<8x512xf32>
    %cst_35 = arith.constant 1.000000e+00 : f32
    %161 = vector.broadcast %cst_35 : f32 to vector<8x512xf32>
    %162 = arith.addf %161, %160 : vector<8x512xf32>
    %163 = tpu.reciprocal %162 {approx = true} : vector<8x512xf32> -> vector<8x512xf32>
    %c4_36 = arith.constant 4 : index
    %164 = memref.load %arg4[%c4_36] : memref<8xf32, #tpu.memory_space<smem>>
    %165 = vector.broadcast %164 : f32 to vector<8x512xf32>
    %166 = arith.mulf %43, %165 : vector<8x512xf32>
    %c5_37 = arith.constant 5 : index
    %167 = memref.load %arg4[%c5_37] : memref<8xf32, #tpu.memory_space<smem>>
    %168 = vector.broadcast %167 : f32 to vector<8x512xf32>
    %169 = arith.mulf %75, %168 : vector<8x512xf32>
    %170 = arith.addf %166, %169 : vector<8x512xf32>
    %c6_38 = arith.constant 6 : index
    %171 = memref.load %arg4[%c6_38] : memref<8xf32, #tpu.memory_space<smem>>
    %172 = vector.broadcast %171 : f32 to vector<8x512xf32>
    %173 = arith.mulf %107, %172 : vector<8x512xf32>
    %174 = arith.addf %170, %173 : vector<8x512xf32>
    %c7_39 = arith.constant 7 : index
    %175 = memref.load %arg4[%c7_39] : memref<8xf32, #tpu.memory_space<smem>>
    %176 = vector.broadcast %175 : f32 to vector<8x512xf32>
    %177 = arith.mulf %139, %176 : vector<8x512xf32>
    %178 = arith.addf %174, %177 : vector<8x512xf32>
    %c1_40 = arith.constant 1 : index
    %179 = memref.load %arg5[%c1_40] : memref<2xf32, #tpu.memory_space<smem>>
    %180 = vector.broadcast %179 : f32 to vector<8x512xf32>
    %181 = arith.addf %178, %180 : vector<8x512xf32>
    %cst_41 = arith.constant 0.000000e+00 : f32
    %182 = vector.broadcast %cst_41 : f32 to vector<8x512xf32>
    %183 = arith.subf %182, %181 : vector<8x512xf32>
    %184 = math.exp %183 : vector<8x512xf32>
    %cst_42 = arith.constant 1.000000e+00 : f32
    %185 = vector.broadcast %cst_42 : f32 to vector<8x512xf32>
    %186 = arith.addf %185, %184 : vector<8x512xf32>
    %187 = tpu.reciprocal %186 {approx = true} : vector<8x512xf32> -> vector<8x512xf32>
    %c0_43 = arith.constant 0 : index
    %188 = memref.load %arg6[%c0_43] : memref<2xf32, #tpu.memory_space<smem>>
    %189 = vector.broadcast %188 : f32 to vector<8x512xf32>
    %190 = arith.mulf %163, %189 : vector<8x512xf32>
    %c1_44 = arith.constant 1 : index
    %191 = memref.load %arg6[%c1_44] : memref<2xf32, #tpu.memory_space<smem>>
    %192 = vector.broadcast %191 : f32 to vector<8x512xf32>
    %193 = arith.mulf %187, %192 : vector<8x512xf32>
    %194 = arith.addf %190, %193 : vector<8x512xf32>
    %c0_45 = arith.constant 0 : index
    %195 = memref.load %arg7[%c0_45] : memref<1xf32, #tpu.memory_space<smem>>
    %196 = vector.broadcast %195 : f32 to vector<8x512xf32>
    %197 = arith.addf %194, %196 : vector<8x512xf32>
    %cst_46 = arith.constant 0.000000e+00 : f32
    %198 = vector.broadcast %cst_46 : f32 to vector<8x512xf32>
    %199 = arith.subf %198, %197 : vector<8x512xf32>
    %200 = math.exp %199 : vector<8x512xf32>
    %cst_47 = arith.constant 1.000000e+00 : f32
    %201 = vector.broadcast %cst_47 : f32 to vector<8x512xf32>
    %202 = arith.addf %201, %200 : vector<8x512xf32>
    %203 = tpu.reciprocal %202 {approx = true} : vector<8x512xf32> -> vector<8x512xf32>
    %c0_48 = arith.constant 0 : index
    %c0_49 = arith.constant 0 : index
    %204 = vector.load %arg8[%c0_48, %c0_49] : memref<8x512xf32, #tpu.memory_space<vmem>>, vector<8x512xf32>
    tpu.vector_store %arg8[%c0_48, %c0_49], %203 {strides = array<i32>} : memref<8x512xf32, #tpu.memory_space<vmem>>, vector<8x512xf32>,
    return
  }
  func.func @transform_0(%arg0: i32) -> (i32, i32, i32) {
    %c0_i32 = arith.constant 0 : i32
    %c0_i32_0 = arith.constant 0 : i32
    %c0_i32_1 = arith.constant 0 : i32
    return %c0_i32, %arg0, %c0_i32_0 : i32, i32, i32
  }
  func.func @transform_1(%arg0: i32) -> i32 {
    %c0_i32 = arith.constant 0 : i32
    %c0_i32_0 = arith.constant 0 : i32
    return %c0_i32 : i32
  }
  func.func @transform_2(%arg0: i32) -> i32 {
    %c0_i32 = arith.constant 0 : i32
    %c0_i32_0 = arith.constant 0 : i32
    return %c0_i32 : i32
  }
  func.func @transform_3(%arg0: i32) -> i32 {
    %c0_i32 = arith.constant 0 : i32
    %c0_i32_0 = arith.constant 0 : i32
    return %c0_i32 : i32
  }
  func.func @transform_4(%arg0: i32) -> i32 {
    %c0_i32 = arith.constant 0 : i32
    %c0_i32_0 = arith.constant 0 : i32
    return %c0_i32 : i32
  }
  func.func @transform_5(%arg0: i32) -> i32 {
    %c0_i32 = arith.constant 0 : i32
    %c0_i32_0 = arith.constant 0 : i32
    return %c0_i32 : i32
  }
  func.func @transform_6(%arg0: i32) -> i32 {
    %c0_i32 = arith.constant 0 : i32
    %c0_i32_0 = arith.constant 0 : i32
    return %c0_i32 : i32
  }
  func.func @transform_7(%arg0: i32) -> (i32, i32) {
    %c0_i32 = arith.constant 0 : i32
    %c0_i32_0 = arith.constant 0 : i32
    return %arg0, %c0_i32 : i32, i32
  }
}

</mosaic_0001>

<llo_original>
// kernel: tpu_custom_call.1
$region0: #{tpu_custom_call.1}
  #allocation0 [shape = 'u32[]', space=smem, size = 0x4, offset = 0x4, fixed_abs, tag = 'smem constant byte address 0x4 - core index']
  #allocation1 [shape = 'u32[144,128]{1,0:T(1,128)}', space=vmem, size = 0x12000, scoped, tag = 'internal scratch']
  #allocation2 [shape = 'f32[1]{0:T(128)S(6)}', space=smem, size = 0x200, scoped, tag = 'scoped memory for tpu_custom_call.1']
  %s0 = inlined_call_operand.hbm [shape: f32[6,8,512], index: 0, kind: input, shape index: {}]
  %s1 = inlined_call_operand.vmem [shape: f32[24], index: 1, kind: input, shape index: {}]
  %s2 = inlined_call_operand.vmem [shape: f32[4], index: 2, kind: input, shape index: {}]
  %s3 = inlined_call_operand.vmem [shape: f32[8], index: 3, kind: input, shape index: {}]
  %s4 = inlined_call_operand.vmem [shape: f32[2], index: 4, kind: input, shape index: {}]
  %s5 = inlined_call_operand.vmem [shape: f32[2], index: 5, kind: input, shape index: {}]
  %s6 = inlined_call_operand.<no memory space> [shape: f32[1], index: 6, kind: input, shape index: {}]
  %s7 = inlined_call_operand.hbm [shape: f32[8,512], index: 7, kind: output, shape index: {}]
  %s8 = sld [smem:[#allocation0]]
  $region62: #{tpu_custom_call.1} parent=0
    _
  %s10 = ssub.s32 1, %s8
  %s11 = scalar_select 0, %s10, %s8
  %12 = sst [smem:[#allocation2]] %s6
  $region1: #{tpu_custom_call.1} parent=0
    #allocation3 [shape = 'u8[98304]{0}', space=vmem, size = 0x18000, scoped, tag = 'input window, operand 0, single buffered']
    #allocation4 [shape = 's32[1]{0}', space=sflag, size = 0x4, scoped, tag = 'scoped memory for tpu_custom_call.1']
    #allocation5 [shape = 's32[1]{0}', space=sflag, size = 0x4, scoped, tag = 'scoped memory for tpu_custom_call.1']
    #allocation6 [shape = 's32[1]{0}', space=sflag, size = 0x4, scoped, tag = 'scoped memory for tpu_custom_call.1']
    #allocation7 [shape = 'u8[512]{0}', space=smem, size = 0x200, scoped, tag = 'input window, operand 1, single buffered']
    #allocation8 [shape = 'u8[512]{0}', space=smem, size = 0x200, scoped, tag = 'input window, operand 2, single buffered']
    #allocation9 [shape = 's32[1]{0}', space=sflag, size = 0x4, scoped, tag = 'scoped memory for tpu_custom_call.1']
    #allocation10 [shape = 'u8[512]{0}', space=smem, size = 0x200, scoped, tag = 'input window, operand 3, single buffered']
    #allocation11 [shape = 'u8[512]{0}', space=smem, size = 0x200, scoped, tag = 'input window, operand 4, single buffered']
    #allocation12 [shape = 's32[1]{0}', space=sflag, size = 0x4, scoped, tag = 'scoped memory for tpu_custom_call.1']
    #allocation13 [shape = 'u8[512]{0}', space=smem, size = 0x200, scoped, tag = 'input window, operand 5, single buffered']
    #allocation14 [shape = 'u8[16384]{0}', space=vmem, size = 0x4000, scoped, tag = 'output window, operand 0, single buffered']
    %13 = vsyncpa [#allocation4], 0
    %14 = vsyncpa [#allocation6], 0
    %15 = vsyncpa [#allocation9], 0
    %16 = vsyncpa [#allocation12], 0
    %17 = vsyncpa [#allocation5], 0
    // Predicated region
    $region2: #{tpu_custom_call.1} parent=1 // pred_check
      _
    $region3: #{tpu_custom_call.1} parent=1 // pred_check_branch
      %19 = sbr.rel (0) target = $region5
    $region4: #{tpu_custom_call.1} parent=1 // pred_region
      %s21 = ssub.s32 3072, 3072
      %22 = vsyncadd [#allocation4], %s21
      %s23 = sshll.u32 [#allocation3], 4
      %s24 = int_to_ptr.vmem [resolvable:$true] %s23
      %29 = dma.hbm_to_vmem [thread:$0]  %s0, 3072, %s24, [#allocation4], 512, 512, 32
    $region5: #{tpu_custom_call.1} parent=1 // pred_fallthru
      _
    // Predicated region
    $region6: #{tpu_custom_call.1} parent=1 // pred_check
      _
    $region7: #{tpu_custom_call.1} parent=1 // pred_check_branch
      %31 = sbr.rel (0) target = $region9
    $region8: #{tpu_custom_call.1} parent=1 // pred_region
      %s33 = ssub.s32 16, 16
      %34 = vsyncadd [#allocation6], %s33
      %s36 = sshll.u32 %s1, 4
      %s37 = int_to_ptr.vmem [resolvable:$true] %s36
      %39 = dma.vmem_to_smem %s37, 16, [#allocation7], [#allocation6]
    $region9: #{tpu_custom_call.1} parent=1 // pred_fallthru
      _
    // Predicated region
    $region10: #{tpu_custom_call.1} parent=1 // pred_check
      _
    $region11: #{tpu_custom_call.1} parent=1 // pred_check_branch
      %41 = sbr.rel (0) target = $region13
    $region12: #{tpu_custom_call.1} parent=1 // pred_region
      %s43 = ssub.s32 16, 16
      %44 = vsyncadd [#allocation9], %s43
      %s46 = sshll.u32 %s2, 4
      %s47 = int_to_ptr.vmem [resolvable:$true] %s46
      %49 = dma.vmem_to_smem %s47, 16, [#allocation8], [#allocation9]
    $region13: #{tpu_custom_call.1} parent=1 // pred_fallthru
      _
    // Predicated region
    $region14: #{tpu_custom_call.1} parent=1 // pred_check
      _
    $region15: #{tpu_custom_call.1} parent=1 // pred_check_branch
      %51 = sbr.rel (0) target = $region17
    $region16: #{tpu_custom_call.1} parent=1 // pred_region
      %s53 = ssub.s32 16, 16
      %54 = vsyncadd [#allocation9], %s53
      %s56 = sshll.u32 %s3, 4
      %s57 = int_to_ptr.vmem [resolvable:$true] %s56
      %59 = dma.vmem_to_smem %s57, 16, [#allocation10], [#allocation9]
    $region17: #{tpu_custom_call.1} parent=1 // pred_fallthru
      _
    // Predicated region
    $region18: #{tpu_custom_call.1} parent=1 // pred_check
      _
    $region19: #{tpu_custom_call.1} parent=1 // pred_check_branch
      %61 = sbr.rel (0) target = $region21
    $region20: #{tpu_custom_call.1} parent=1 // pred_region
      %s63 = ssub.s32 16, 16
      %64 = vsyncadd [#allocation12], %s63
      %s66 = sshll.u32 %s4, 4
      %s67 = int_to_ptr.vmem [resolvable:$true] %s66
      %69 = dma.vmem_to_smem %s67, 16, [#allocation11], [#allocation12]
    $region21: #{tpu_custom_call.1} parent=1 // pred_fallthru
      _
    // Predicated region
    $region22: #{tpu_custom_call.1} parent=1 // pred_check
      _
    $region23: #{tpu_custom_call.1} parent=1 // pred_check_branch
      %71 = sbr.rel (0) target = $region25
    $region24: #{tpu_custom_call.1} parent=1 // pred_region
      %s73 = ssub.s32 16, 16
      %74 = vsyncadd [#allocation12], %s73
      %s76 = sshll.u32 %s5, 4
      %s77 = int_to_ptr.vmem [resolvable:$true] %s76
      %79 = dma.vmem_to_smem %s77, 16, [#allocation13], [#allocation12]
    $region25: #{tpu_custom_call.1} parent=1 // pred_fallthru
      _
    // Predicated region
    $region26: #{tpu_custom_call.1} parent=1 // pred_check
      _
    $region27: #{tpu_custom_call.1} parent=1 // pred_check_branch
      %81 = sbr.rel (0) target = $region29
    $region28: #{tpu_custom_call.1} parent=1 // pred_region
      _
    $region29: #{tpu_custom_call.1} parent=1 // pred_fallthru
      _
    // Predicated region
    $region30: #{tpu_custom_call.1} parent=1 // pred_check
      _
    $region31: #{tpu_custom_call.1} parent=1 // pred_check_branch
      %83 = sbr.rel (0) target = $region33
    $region32: #{tpu_custom_call.1} parent=1 // pred_region
      %84 = dma.done [#allocation4], 3072
    $region33: #{tpu_custom_call.1} parent=1 // pred_fallthru
      _
    // Predicated region
    $region34: #{tpu_custom_call.1} parent=1 // pred_check
      _
    $region35: #{tpu_custom_call.1} parent=1 // pred_check_branch
      %86 = sbr.rel (0) target = $region37
    $region36: #{tpu_custom_call.1} parent=1 // pred_region
      %87 = dma.done [#allocation6], 16
    $region37: #{tpu_custom_call.1} parent=1 // pred_fallthru
      _
    // Predicated region
    $region38: #{tpu_custom_call.1} parent=1 // pred_check
      _
    $region39: #{tpu_custom_call.1} parent=1 // pred_check_branch
      %89 = sbr.rel (0) target = $region41
    $region40: #{tpu_custom_call.1} parent=1 // pred_region
      %90 = dma.done [#allocation9], 16
    $region41: #{tpu_custom_call.1} parent=1 // pred_fallthru
      _
    // Predicated region
    $region42: #{tpu_custom_call.1} parent=1 // pred_check
      _
    $region43: #{tpu_custom_call.1} parent=1 // pred_check_branch
      %92 = sbr.rel (0) target = $region45
    $region44: #{tpu_custom_call.1} parent=1 // pred_region
      %93 = dma.done [#allocation9], 16
    $region45: #{tpu_custom_call.1} parent=1 // pred_fallthru
      _
    // Predicated region
    $region46: #{tpu_custom_call.1} parent=1 // pred_check
      _
    $region47: #{tpu_custom_call.1} parent=1 // pred_check_branch
      %95 = sbr.rel (0) target = $region49
    $region48: #{tpu_custom_call.1} parent=1 // pred_region
      %96 = dma.done [#allocation12], 16
    $region49: #{tpu_custom_call.1} parent=1 // pred_fallthru
      _
    // Predicated region
    $region50: #{tpu_custom_call.1} parent=1 // pred_check
      _
    $region51: #{tpu_custom_call.1} parent=1 // pred_check_branch
      %98 = sbr.rel (0) target = $region53
    $region52: #{tpu_custom_call.1} parent=1 // pred_region
      %99 = dma.done [#allocation12], 16
    $region53: #{tpu_custom_call.1} parent=1 // pred_fallthru
      _
    %100 = sfence
    %v101 = vld [vmem:[#allocation3] sm:$0xff]
    %v102 = vld [vmem:[#allocation3 + $0x8] sm:$0xff]
    %v103 = vld [vmem:[#allocation3 + $0x10] sm:$0xff]
    %v104 = vld [vmem:[#allocation3 + $0x18] sm:$0xff]
    %s105 = scalar_lea.vmem [#allocation3], 32
    %v106 = vld [vmem:[%s105] sm:$0xff]
    %v107 = vld [vmem:[%s105 + $0x8] sm:$0xff]
    %v108 = vld [vmem:[%s105 + $0x10] sm:$0xff]
    %v109 = vld [vmem:[%s105 + $0x18] sm:$0xff]
    %s110 = scalar_lea.vmem [#allocation3], 64
    %v111 = vld [vmem:[%s110] sm:$0xff]
    %v112 = vld [vmem:[%s110 + $0x8] sm:$0xff]
    %v113 = vld [vmem:[%s110 + $0x10] sm:$0xff]
    %v114 = vld [vmem:[%s110 + $0x18] sm:$0xff]
    %s115 = scalar_lea.vmem [#allocation3], 96
    %v116 = vld [vmem:[%s115] sm:$0xff]
    %v117 = vld [vmem:[%s115 + $0x8] sm:$0xff]
    %v118 = vld [vmem:[%s115 + $0x10] sm:$0xff]
    %v119 = vld [vmem:[%s115 + $0x18] sm:$0xff]
    %s120 = scalar_lea.vmem [#allocation3], 128
    %v121 = vld [vmem:[%s120] sm:$0xff]
    %v122 = vld [vmem:[%s120 + $0x8] sm:$0xff]
    %v123 = vld [vmem:[%s120 + $0x10] sm:$0xff]
    %v124 = vld [vmem:[%s120 + $0x18] sm:$0xff]
    %s125 = scalar_lea.vmem [#allocation3], 160
    %v126 = vld [vmem:[%s125] sm:$0xff]
    %v127 = vld [vmem:[%s125 + $0x8] sm:$0xff]
    %v128 = vld [vmem:[%s125 + $0x10] sm:$0xff]
    %v129 = vld [vmem:[%s125 + $0x18] sm:$0xff]
    %s130 = sld [smem:[#allocation7]]
    %v131 = vstv %s130
    %v132 = vmul.f32 %v101, %v131
    %v133 = vmul.f32 %v102, %v131
    %v134 = vmul.f32 %v103, %v131
    %v135 = vmul.f32 %v104, %v131
    %s136 = sld [smem:[#allocation7 + $0x1]]
    %v137 = vstv %s136
    %v138 = vmul.f32 %v106, %v137
    %v139 = vmul.f32 %v107, %v137
    %v140 = vmul.f32 %v108, %v137
    %v141 = vmul.f32 %v109, %v137
    %v142 = vadd.f32 %v132, %v138
    %v143 = vadd.f32 %v133, %v139
    %v144 = vadd.f32 %v134, %v140
    %v145 = vadd.f32 %v135, %v141
    %s146 = sld [smem:[#allocation7 + $0x2]]
    %v147 = vstv %s146
    %v148 = vmul.f32 %v111, %v147
    %v149 = vmul.f32 %v112, %v147
    %v150 = vmul.f32 %v113, %v147
    %v151 = vmul.f32 %v114, %v147
    %v152 = vadd.f32 %v142, %v148
    %v153 = vadd.f32 %v143, %v149
    %v154 = vadd.f32 %v144, %v150
    %v155 = vadd.f32 %v145, %v151
    %s156 = sld [smem:[#allocation7 + $0x3]]
    %v157 = vstv %s156
    %v158 = vmul.f32 %v116, %v157
    %v159 = vmul.f32 %v117, %v157
    %v160 = vmul.f32 %v118, %v157
    %v161 = vmul.f32 %v119, %v157
    %v162 = vadd.f32 %v152, %v158
    %v163 = vadd.f32 %v153, %v159
    %v164 = vadd.f32 %v154, %v160
    %v165 = vadd.f32 %v155, %v161
    %s166 = sld [smem:[#allocation7 + $0x4]]
    %v167 = vstv %s166
    %v168 = vmul.f32 %v121, %v167
    %v169 = vmul.f32 %v122, %v167
    %v170 = vmul.f32 %v123, %v167
    %v171 = vmul.f32 %v124, %v167
    %v172 = vadd.f32 %v162, %v168
    %v173 = vadd.f32 %v163, %v169
    %v174 = vadd.f32 %v164, %v170
    %v175 = vadd.f32 %v165, %v171
    %s176 = sld [smem:[#allocation7 + $0x5]]
    %v177 = vstv %s176
    %v178 = vmul.f32 %v126, %v177
    %v179 = vmul.f32 %v127, %v177
    %v180 = vmul.f32 %v128, %v177
    %v181 = vmul.f32 %v129, %v177
    %v182 = vadd.f32 %v172, %v178
    %v183 = vadd.f32 %v173, %v179
    %v184 = vadd.f32 %v174, %v180
    %v185 = vadd.f32 %v175, %v181
    %s186 = sld [smem:[#allocation8]]
    %v187 = vstv %s186
    %v188 = vadd.f32 %v182, %v187
    %v189 = vadd.f32 %v183, %v187
    %v190 = vadd.f32 %v184, %v187
    %v191 = vadd.f32 %v185, %v187
    %v192 = vsub.f32 0.0, %v188
    %v193 = vsub.f32 0.0, %v189
    %v194 = vsub.f32 0.0, %v190
    %v195 = vsub.f32 0.0, %v191
    %v196 = vmul.f32 %v192, 1.442695
    %v197 = vpow.pop %v196
    %v198 = vmul.f32 %v193, 1.442695
    %v199 = vpow.pop %v198
    %v200 = vmul.f32 %v194, 1.442695
    %v201 = vpow.pop %v200
    %v202 = vmul.f32 %v195, 1.442695
    %v203 = vpow.pop %v202
    %v204 = vadd.f32 %v197, 1.0
    %v205 = vadd.f32 %v199, 1.0
    %v206 = vadd.f32 %v201, 1.0
    %v207 = vadd.f32 %v203, 1.0
    %v208 = vrcp.pop %v204
    %v209 = vrcp.pop %v205
    %v210 = vrcp.pop %v206
    %v211 = vrcp.pop %v207
    %s212 = sld [smem:[#allocation7 + $0x6]]
    %v213 = vstv %s212
    %v214 = vmul.f32 %v101, %v213
    %v215 = vmul.f32 %v102, %v213
    %v216 = vmul.f32 %v103, %v213
    %v217 = vmul.f32 %v104, %v213
    %s218 = sld [smem:[#allocation7 + $0x7]]
    %v219 = vstv %s218
    %v220 = vmul.f32 %v106, %v219
    %v221 = vmul.f32 %v107, %v219
    %v222 = vmul.f32 %v108, %v219
    %v223 = vmul.f32 %v109, %v219
    %v224 = vadd.f32 %v214, %v220
    %v225 = vadd.f32 %v215, %v221
    %v226 = vadd.f32 %v216, %v222
    %v227 = vadd.f32 %v217, %v223
    %s228 = sld [smem:[#allocation7 + $0x8]]
    %v229 = vstv %s228
    %v230 = vmul.f32 %v111, %v229
    %v231 = vmul.f32 %v112, %v229
    %v232 = vmul.f32 %v113, %v229
    %v233 = vmul.f32 %v114, %v229
    %v234 = vadd.f32 %v224, %v230
    %v235 = vadd.f32 %v225, %v231
    %v236 = vadd.f32 %v226, %v232
    %v237 = vadd.f32 %v227, %v233
    %s238 = sld [smem:[#allocation7 + $0x9]]
    %v239 = vstv %s238
    %v240 = vmul.f32 %v116, %v239
    %v241 = vmul.f32 %v117, %v239
    %v242 = vmul.f32 %v118, %v239
    %v243 = vmul.f32 %v119, %v239
    %v244 = vadd.f32 %v234, %v240
    %v245 = vadd.f32 %v235, %v241
    %v246 = vadd.f32 %v236, %v242
    %v247 = vadd.f32 %v237, %v243
    %s248 = sld [smem:[#allocation7 + $0xa]]
    %v249 = vstv %s248
    %v250 = vmul.f32 %v121, %v249
    %v251 = vmul.f32 %v122, %v249
    %v252 = vmul.f32 %v123, %v249
    %v253 = vmul.f32 %v124, %v249
    %v254 = vadd.f32 %v244, %v250
    %v255 = vadd.f32 %v245, %v251
    %v256 = vadd.f32 %v246, %v252
    %v257 = vadd.f32 %v247, %v253
    %s258 = sld [smem:[#allocation7 + $0xb]]
    %v259 = vstv %s258
    %v260 = vmul.f32 %v126, %v259
    %v261 = vmul.f32 %v127, %v259
    %v262 = vmul.f32 %v128, %v259
    %v263 = vmul.f32 %v129, %v259
    %v264 = vadd.f32 %v254, %v260
    %v265 = vadd.f32 %v255, %v261
    %v266 = vadd.f32 %v256, %v262
    %v267 = vadd.f32 %v257, %v263
    %s268 = sld [smem:[#allocation8 + $0x1]]
    %v269 = vstv %s268
    %v270 = vadd.f32 %v264, %v269
    %v271 = vadd.f32 %v265, %v269
    %v272 = vadd.f32 %v266, %v269
    %v273 = vadd.f32 %v267, %v269
    %v274 = vsub.f32 0.0, %v270
    %v275 = vsub.f32 0.0, %v271
    %v276 = vsub.f32 0.0, %v272
    %v277 = vsub.f32 0.0, %v273
    %v278 = vmul.f32 %v274, 1.442695
    %v279 = vpow.pop %v278
    %v280 = vmul.f32 %v275, 1.442695
    %v281 = vpow.pop %v280
    %v282 = vmul.f32 %v276, 1.442695
    %v283 = vpow.pop %v282
    %v284 = vmul.f32 %v277, 1.442695
    %v285 = vpow.pop %v284
    %v286 = vadd.f32 %v279, 1.0
    %v287 = vadd.f32 %v281, 1.0
    %v288 = vadd.f32 %v283, 1.0
    %v289 = vadd.f32 %v285, 1.0
    %v290 = vrcp.pop %v286
    %v291 = vrcp.pop %v287
    %v292 = vrcp.pop %v288
    %v293 = vrcp.pop %v289
    %s294 = sld [smem:[#allocation7 + $0xc]]
    %v295 = vstv %s294
    %v296 = vmul.f32 %v101, %v295
    %v297 = vmul.f32 %v102, %v295
    %v298 = vmul.f32 %v103, %v295
    %v299 = vmul.f32 %v104, %v295
    %s300 = sld [smem:[#allocation7 + $0xd]]
    %v301 = vstv %s300
    %v302 = vmul.f32 %v106, %v301
    %v303 = vmul.f32 %v107, %v301
    %v304 = vmul.f32 %v108, %v301
    %v305 = vmul.f32 %v109, %v301
    %v306 = vadd.f32 %v296, %v302
    %v307 = vadd.f32 %v297, %v303
    %v308 = vadd.f32 %v298, %v304
    %v309 = vadd.f32 %v299, %v305
    %s310 = sld [smem:[#allocation7 + $0xe]]
    %v311 = vstv %s310
    %v312 = vmul.f32 %v111, %v311
    %v313 = vmul.f32 %v112, %v311
    %v314 = vmul.f32 %v113, %v311
    %v315 = vmul.f32 %v114, %v311
    %v316 = vadd.f32 %v306, %v312
    %v317 = vadd.f32 %v307, %v313
    %v318 = vadd.f32 %v308, %v314
    %v319 = vadd.f32 %v309, %v315
    %s320 = sld [smem:[#allocation7 + $0xf]]
    %v321 = vstv %s320
    %v322 = vmul.f32 %v116, %v321
    %v323 = vmul.f32 %v117, %v321
    %v324 = vmul.f32 %v118, %v321
    %v325 = vmul.f32 %v119, %v321
    %v326 = vadd.f32 %v316, %v322
    %v327 = vadd.f32 %v317, %v323
    %v328 = vadd.f32 %v318, %v324
    %v329 = vadd.f32 %v319, %v325
    %s330 = sld [smem:[#allocation7 + $0x10]]
    %v331 = vstv %s330
    %v332 = vmul.f32 %v121, %v331
    %v333 = vmul.f32 %v122, %v331
    %v334 = vmul.f32 %v123, %v331
    %v335 = vmul.f32 %v124, %v331
    %v336 = vadd.f32 %v326, %v332
    %v337 = vadd.f32 %v327, %v333
    %v338 = vadd.f32 %v328, %v334
    %v339 = vadd.f32 %v329, %v335
    %s340 = sld [smem:[#allocation7 + $0x11]]
    %v341 = vstv %s340
    %v342 = vmul.f32 %v126, %v341
    %v343 = vmul.f32 %v127, %v341
    %v344 = vmul.f32 %v128, %v341
    %v345 = vmul.f32 %v129, %v341
    %v346 = vadd.f32 %v336, %v342
    %v347 = vadd.f32 %v337, %v343
    %v348 = vadd.f32 %v338, %v344
    %v349 = vadd.f32 %v339, %v345
    %s350 = sld [smem:[#allocation8 + $0x2]]
    %v351 = vstv %s350
    %v352 = vadd.f32 %v346, %v351
    %v353 = vadd.f32 %v347, %v351
    %v354 = vadd.f32 %v348, %v351
    %v355 = vadd.f32 %v349, %v351
    %v356 = vsub.f32 0.0, %v352
    %v357 = vsub.f32 0.0, %v353
    %v358 = vsub.f32 0.0, %v354
    %v359 = vsub.f32 0.0, %v355
    %v360 = vmul.f32 %v356, 1.442695
    %v361 = vpow.pop %v360
    %v362 = vmul.f32 %v357, 1.442695
    %v363 = vpow.pop %v362
    %v364 = vmul.f32 %v358, 1.442695
    %v365 = vpow.pop %v364
    %v366 = vmul.f32 %v359, 1.442695
    %v367 = vpow.pop %v366
    %v368 = vadd.f32 %v361, 1.0
    %v369 = vadd.f32 %v363, 1.0
    %v370 = vadd.f32 %v365, 1.0
    %v371 = vadd.f32 %v367, 1.0
    %v372 = vrcp.pop %v368
    %v373 = vrcp.pop %v369
    %v374 = vrcp.pop %v370
    %v375 = vrcp.pop %v371
    %s376 = sld [smem:[#allocation7 + $0x12]]
    %v377 = vstv %s376
    %v378 = vmul.f32 %v101, %v377
    %v379 = vmul.f32 %v102, %v377
    %v380 = vmul.f32 %v103, %v377
    %v381 = vmul.f32 %v104, %v377
    %s382 = sld [smem:[#allocation7 + $0x13]]
    %v383 = vstv %s382
    %v384 = vmul.f32 %v106, %v383
    %v385 = vmul.f32 %v107, %v383
    %v386 = vmul.f32 %v108, %v383
    %v387 = vmul.f32 %v109, %v383
    %v388 = vadd.f32 %v378, %v384
    %v389 = vadd.f32 %v379, %v385
    %v390 = vadd.f32 %v380, %v386
    %v391 = vadd.f32 %v381, %v387
    %s392 = sld [smem:[#allocation7 + $0x14]]
    %v393 = vstv %s392
    %v394 = vmul.f32 %v111, %v393
    %v395 = vmul.f32 %v112, %v393
    %v396 = vmul.f32 %v113, %v393
    %v397 = vmul.f32 %v114, %v393
    %v398 = vadd.f32 %v388, %v394
    %v399 = vadd.f32 %v389, %v395
    %v400 = vadd.f32 %v390, %v396
    %v401 = vadd.f32 %v391, %v397
    %s402 = sld [smem:[#allocation7 + $0x15]]
    %v403 = vstv %s402
    %v404 = vmul.f32 %v116, %v403
    %v405 = vmul.f32 %v117, %v403
    %v406 = vmul.f32 %v118, %v403
    %v407 = vmul.f32 %v119, %v403
    %v408 = vadd.f32 %v398, %v404
    %v409 = vadd.f32 %v399, %v405
    %v410 = vadd.f32 %v400, %v406
    %v411 = vadd.f32 %v401, %v407
    %s412 = sld [smem:[#allocation7 + $0x16]]
    %v413 = vstv %s412
    %v414 = vmul.f32 %v121, %v413
    %v415 = vmul.f32 %v122, %v413
    %v416 = vmul.f32 %v123, %v413
    %v417 = vmul.f32 %v124, %v413
    %v418 = vadd.f32 %v408, %v414
    %v419 = vadd.f32 %v409, %v415
    %v420 = vadd.f32 %v410, %v416
    %v421 = vadd.f32 %v411, %v417
    %s422 = sld [smem:[#allocation7 + $0x17]]
    %v423 = vstv %s422
    %v424 = vmul.f32 %v126, %v423
    %v425 = vmul.f32 %v127, %v423
    %v426 = vmul.f32 %v128, %v423
    %v427 = vmul.f32 %v129, %v423
    %v428 = vadd.f32 %v418, %v424
    %v429 = vadd.f32 %v419, %v425
    %v430 = vadd.f32 %v420, %v426
    %v431 = vadd.f32 %v421, %v427
    %s432 = sld [smem:[#allocation8 + $0x3]]
    %v433 = vstv %s432
    %v434 = vadd.f32 %v428, %v433
    %v435 = vadd.f32 %v429, %v433
    %v436 = vadd.f32 %v430, %v433
    %v437 = vadd.f32 %v431, %v433
    %v438 = vsub.f32 0.0, %v434
    %v439 = vsub.f32 0.0, %v435
    %v440 = vsub.f32 0.0, %v436
    %v441 = vsub.f32 0.0, %v437
    %v442 = vmul.f32 %v438, 1.442695
    %v443 = vpow.pop %v442
    %v444 = vmul.f32 %v439, 1.442695
    %v445 = vpow.pop %v444
    %v446 = vmul.f32 %v440, 1.442695
    %v447 = vpow.pop %v446
    %v448 = vmul.f32 %v441, 1.442695
    %v449 = vpow.pop %v448
    %v450 = vadd.f32 %v443, 1.0
    %v451 = vadd.f32 %v445, 1.0
    %v452 = vadd.f32 %v447, 1.0
    %v453 = vadd.f32 %v449, 1.0
    %v454 = vrcp.pop %v450
    %v455 = vrcp.pop %v451
    %v456 = vrcp.pop %v452
    %v457 = vrcp.pop %v453
    %s458 = sld [smem:[#allocation10]]
    %v459 = vstv %s458
    %v460 = vmul.f32 %v208, %v459
    %v461 = vmul.f32 %v209, %v459
    %v462 = vmul.f32 %v210, %v459
    %v463 = vmul.f32 %v211, %v459
    %s464 = sld [smem:[#allocation10 + $0x1]]
    %v465 = vstv %s464
    %v466 = vmul.f32 %v290, %v465
    %v467 = vmul.f32 %v291, %v465
    %v468 = vmul.f32 %v292, %v465
    %v469 = vmul.f32 %v293, %v465
    %v470 = vadd.f32 %v460, %v466
    %v471 = vadd.f32 %v461, %v467
    %v472 = vadd.f32 %v462, %v468
    %v473 = vadd.f32 %v463, %v469
    %s474 = sld [smem:[#allocation10 + $0x2]]
    %v475 = vstv %s474
    %v476 = vmul.f32 %v372, %v475
    %v477 = vmul.f32 %v373, %v475
    %v478 = vmul.f32 %v374, %v475
    %v479 = vmul.f32 %v375, %v475
    %v480 = vadd.f32 %v470, %v476
    %v481 = vadd.f32 %v471, %v477
    %v482 = vadd.f32 %v472, %v478
    %v483 = vadd.f32 %v473, %v479
    %s484 = sld [smem:[#allocation10 + $0x3]]
    %v485 = vstv %s484
    %v486 = vmul.f32 %v454, %v485
    %v487 = vmul.f32 %v455, %v485
    %v488 = vmul.f32 %v456, %v485
    %v489 = vmul.f32 %v457, %v485
    %v490 = vadd.f32 %v480, %v486
    %v491 = vadd.f32 %v481, %v487
    %v492 = vadd.f32 %v482, %v488
    %v493 = vadd.f32 %v483, %v489
    %s494 = sld [smem:[#allocation11]]
    %v495 = vstv %s494
    %v496 = vadd.f32 %v490, %v495
    %v497 = vadd.f32 %v491, %v495
    %v498 = vadd.f32 %v492, %v495
    %v499 = vadd.f32 %v493, %v495
    %v500 = vsub.f32 0.0, %v496
    %v501 = vsub.f32 0.0, %v497
    %v502 = vsub.f32 0.0, %v498
    %v503 = vsub.f32 0.0, %v499
    %v504 = vmul.f32 %v500, 1.442695
    %v505 = vpow.pop %v504
    %v506 = vmul.f32 %v501, 1.442695
    %v507 = vpow.pop %v506
    %v508 = vmul.f32 %v502, 1.442695
    %v509 = vpow.pop %v508
    %v510 = vmul.f32 %v503, 1.442695
    %v511 = vpow.pop %v510
    %v512 = vadd.f32 %v505, 1.0
    %v513 = vadd.f32 %v507, 1.0
    %v514 = vadd.f32 %v509, 1.0
    %v515 = vadd.f32 %v511, 1.0
    %v516 = vrcp.pop %v512
    %v517 = vrcp.pop %v513
    %v518 = vrcp.pop %v514
    %v519 = vrcp.pop %v515
    %s520 = sld [smem:[#allocation10 + $0x4]]
    %v521 = vstv %s520
    %v522 = vmul.f32 %v208, %v521
    %v523 = vmul.f32 %v209, %v521
    %v524 = vmul.f32 %v210, %v521
    %v525 = vmul.f32 %v211, %v521
    %s526 = sld [smem:[#allocation10 + $0x5]]
    %v527 = vstv %s526
    %v528 = vmul.f32 %v290, %v527
    %v529 = vmul.f32 %v291, %v527
    %v530 = vmul.f32 %v292, %v527
    %v531 = vmul.f32 %v293, %v527
    %v532 = vadd.f32 %v522, %v528
    %v533 = vadd.f32 %v523, %v529
    %v534 = vadd.f32 %v524, %v530
    %v535 = vadd.f32 %v525, %v531
    %s536 = sld [smem:[#allocation10 + $0x6]]
    %v537 = vstv %s536
    %v538 = vmul.f32 %v372, %v537
    %v539 = vmul.f32 %v373, %v537
    %v540 = vmul.f32 %v374, %v537
    %v541 = vmul.f32 %v375, %v537
    %v542 = vadd.f32 %v532, %v538
    %v543 = vadd.f32 %v533, %v539
    %v544 = vadd.f32 %v534, %v540
    %v545 = vadd.f32 %v535, %v541
    %s546 = sld [smem:[#allocation10 + $0x7]]
    %v547 = vstv %s546
    %v548 = vmul.f32 %v454, %v547
    %v549 = vmul.f32 %v455, %v547
    %v550 = vmul.f32 %v456, %v547
    %v551 = vmul.f32 %v457, %v547
    %v552 = vadd.f32 %v542, %v548
    %v553 = vadd.f32 %v543, %v549
    %v554 = vadd.f32 %v544, %v550
    %v555 = vadd.f32 %v545, %v551
    %s556 = sld [smem:[#allocation11 + $0x1]]
    %v557 = vstv %s556
    %v558 = vadd.f32 %v552, %v557
    %v559 = vadd.f32 %v553, %v557
    %v560 = vadd.f32 %v554, %v557
    %v561 = vadd.f32 %v555, %v557
    %v562 = vsub.f32 0.0, %v558
    %v563 = vsub.f32 0.0, %v559
    %v564 = vsub.f32 0.0, %v560
    %v565 = vsub.f32 0.0, %v561
    %v566 = vmul.f32 %v562, 1.442695
    %v567 = vpow.pop %v566
    %v568 = vmul.f32 %v563, 1.442695
    %v569 = vpow.pop %v568
    %v570 = vmul.f32 %v564, 1.442695
    %v571 = vpow.pop %v570
    %v572 = vmul.f32 %v565, 1.442695
    %v573 = vpow.pop %v572
    %v574 = vadd.f32 %v567, 1.0
    %v575 = vadd.f32 %v569, 1.0
    %v576 = vadd.f32 %v571, 1.0
    %v577 = vadd.f32 %v573, 1.0
    %v578 = vrcp.pop %v574
    %v579 = vrcp.pop %v575
    %v580 = vrcp.pop %v576
    %v581 = vrcp.pop %v577
    %s582 = sld [smem:[#allocation13]]
    %v583 = vstv %s582
    %v584 = vmul.f32 %v516, %v583
    %v585 = vmul.f32 %v517, %v583
    %v586 = vmul.f32 %v518, %v583
    %v587 = vmul.f32 %v519, %v583
    %s588 = sld [smem:[#allocation13 + $0x1]]
    %v589 = vstv %s588
    %v590 = vmul.f32 %v578, %v589
    %v591 = vmul.f32 %v579, %v589
    %v592 = vmul.f32 %v580, %v589
    %v593 = vmul.f32 %v581, %v589
    %v594 = vadd.f32 %v584, %v590
    %v595 = vadd.f32 %v585, %v591
    %v596 = vadd.f32 %v586, %v592
    %v597 = vadd.f32 %v587, %v593
    %s598 = sld [smem:[#allocation2]]
    %v599 = vstv %s598
    %v600 = vadd.f32 %v594, %v599
    %v601 = vadd.f32 %v595, %v599
    %v602 = vadd.f32 %v596, %v599
    %v603 = vadd.f32 %v597, %v599
    %v604 = vsub.f32 0.0, %v600
    %v605 = vsub.f32 0.0, %v601
    %v606 = vsub.f32 0.0, %v602
    %v607 = vsub.f32 0.0, %v603
    %v608 = vmul.f32 %v604, 1.442695
    %v609 = vpow.pop %v608
    %v610 = vmul.f32 %v605, 1.442695
    %v611 = vpow.pop %v610
    %v612 = vmul.f32 %v606, 1.442695
    %v613 = vpow.pop %v612
    %v614 = vmul.f32 %v607, 1.442695
    %v615 = vpow.pop %v614
    %v616 = vadd.f32 %v609, 1.0
    %v617 = vadd.f32 %v611, 1.0
    %v618 = vadd.f32 %v613, 1.0
    %v619 = vadd.f32 %v615, 1.0
    %v620 = vrcp.pop %v616
    %v621 = vrcp.pop %v617
    %v622 = vrcp.pop %v618
    %v623 = vrcp.pop %v619
    %624 = vst [vmem:[#allocation14] sm:$0xff] %v620
    %625 = vst [vmem:[#allocation14 + $0x8] sm:$0xff] %v621
    %626 = vst [vmem:[#allocation14 + $0x10] sm:$0xff] %v622
    %627 = vst [vmem:[#allocation14 + $0x18] sm:$0xff] %v623
    // Predicated region
    $region54: #{tpu_custom_call.1} parent=1 // pred_check
      _
    $region55: #{tpu_custom_call.1} parent=1 // pred_check_branch
      %629 = sbr.rel (0) target = $region57
    $region56: #{tpu_custom_call.1} parent=1 // pred_region
      %s631 = ssub.s32 512, 512
      %632 = vsyncadd [#allocation5], %s631
      %s634 = sshll.u32 [#allocation14], 4
      %s635 = int_to_ptr.vmem [resolvable:$true] %s634
      %637 = dma.vmem_to_hbm [thread:$0]  %s635, 512, %s7, [#allocation5]
    $region57: #{tpu_custom_call.1} parent=1 // pred_fallthru
      _
    // Predicated region
    $region58: #{tpu_custom_call.1} parent=1 // pred_check
      _
    $region59: #{tpu_custom_call.1} parent=1 // pred_check_branch
      %639 = sbr.rel (0) target = $region61
    $region60: #{tpu_custom_call.1} parent=1 // pred_region
      %640 = dma.done [#allocation5], 512
    $region61: #{tpu_custom_call.1} parent=1 // pred_fallthru
      _
    %641 = vsyncpa [#allocation4], 1
    %642 = vsyncpa [#allocation5], 1
    %643 = vsyncpa [#allocation6], 1
    %644 = vsyncpa [#allocation9], 1
    %645 = vsyncpa [#allocation12], 1

</llo_original>
